<compile_context>
chip_gen: v5e
topology: v5e:2x2
jax: 0.10.0
libtpu: 0.0.40
codegen_flags: <defaults>
</compile_context>

<pallas_src>
import functools

import jax
import jax.numpy as jnp
from jax.experimental import pallas as pl
from jax.experimental.pallas import tpu as pltpu


def _round_up(x: int, mult: int) -> int:
    return ((x + mult - 1) // mult) * mult


def scorenet_kernel(x_ref, w1t_ref, w2t_ref, b2_ref, o_ref, *,
                    calc_scores, bias, stable_softmax, approx_recip):
    """One (batch, spatial-tile) block, channels-in-sublanes layout.

    x_ref  : [1, C_in, TM]   input block (channels in sublanes, rows in lanes)
    w1t_ref: [H, C_in]       conv #1 weights, [out, in] orientation (bf16, no bias)
    w2t_ref: [m, H]          conv #2 weights, [out, in] orientation (bf16)
    b2_ref : [m, 1]          conv #2 bias (f32)
    o_ref  : [1, m, TM]      scores block (f32)
    """
    mx_dtype = w1t_ref.dtype                     # bf16 (or f32 if mxu_bf16=False)

    # Conv #1: [H, C_in] x [C_in, TM] on the MXU, f32 accumulation.
    x = x_ref[0].astype(mx_dtype)
    h = jnp.dot(w1t_ref[...], x, preferred_element_type=jnp.float32)   # [H, TM] f32
    h = jnp.maximum(h, 0.0)                                            # ReLU (VPU)

    # Conv #2: bf16 h packs [16,128] into one vreg -> single MXU push per 128 lanes.
    s = jnp.dot(w2t_ref[...], h.astype(w2t_ref.dtype),
                preferred_element_type=jnp.float32)                    # [m, TM] f32
    s = s + b2_ref[...]

    if calc_scores == "softmax":
        # softmax over the channel axis (axis 0 here == PyTorch dim=1), f32.
        if stable_softmax:
            # Optional on v6e when XLU binds: logits of this tiny bounded conv
            # rarely need the max-subtraction; keep it by default for safety.
            s = s - jnp.max(s, axis=0, keepdims=True)
        e = jnp.exp(s)
        denom = jnp.sum(e, axis=0, keepdims=True)
        if approx_recip:
            out = e * pl.reciprocal(denom, approx=True)   # EUP slot, ~free
        else:
            out = e / denom
    elif calc_scores == "sigmoid":
        out = jax.nn.sigmoid(s)
    else:
        raise ValueError("Not Implemented!")

    if bias != 0.0:                       # fused bias epilogue (free when 0)
        out = out + bias

    o_ref[0] = out.astype(o_ref.dtype)


def scorenet_forward(xyz, w1, w2, b2, *, calc_scores="softmax", bias=0.0,
                     tile_rows=16384, mxu_bf16=True, stable_softmax=True,
                     approx_softmax_recip=True, out_dtype=jnp.float32,
                     channels_last=True):
    """xyz: [B, 2C, N, K] (NCHW).  w1: [2C, H], w2: [H, m], b2: [m].

    Returns scores of shape [B, N, K, m] (PyTorch layout) when channels_last,
    else [B, m, N, K] (free reshape of the lane-dense kernel output; lets the
    downstream PAConv assign-score einsum absorb the permute and skips an extra
    lane-sparse HBM transpose pass).
    """
    if calc_scores not in ("softmax", "sigmoid"):
        raise ValueError("Not Implemented!")

    B, c_in, N, K = xyz.shape
    hidden = w1.shape[1]
    m = w2.shape[1]
    NK = N * K

    # Flatten spatial positions into the lane axis; NO data movement here.
    x3d = xyz.reshape(B, c_in, NK)

    # Spatial tile: multiple of 128 lanes, as large as reasonable (per-step
    # overhead amortisation + long contiguous DMA runs).
    tm = min(int(tile_rows), _round_up(NK, 128))
    tm = max(128, (tm // 128) * 128)
    if B == 1:
        # v7x megacore: guarantee >= 2 parallel grid steps so both TCs get work.
        half = max(128, _round_up(-(-NK // 2), 128))
        tm = min(tm, half)
    NK_pad = _round_up(NK, tm)
    if NK_pad != NK:
        # Zero-pad the spatial axis so every tile is full; padded columns run
        # through the (cheap) epilogue and are sliced off below.
        x3d = jnp.pad(x3d, ((0, 0), (0, 0), (0, NK_pad - NK)))
    n_tiles = NK_pad // tm

    # Weights in [out, in] orientation (exactly how PyTorch Conv2d stores them).
    # Pre-cast the MXU operands to bf16 on the host (tiny tensors).
    mx_dtype = jnp.bfloat16 if mxu_bf16 else jnp.float32
    w1t = jnp.transpose(w1).astype(mx_dtype)         # [H, 2C]
    w2t = jnp.transpose(w2).astype(mx_dtype)         # [m, H]
    b2c = b2.reshape(m, 1).astype(jnp.float32)       # bias add stays f32 (VPU)

    rows_pad = B * NK_pad
    in_bytes = jnp.dtype(xyz.dtype).itemsize
    out_bytes = jnp.dtype(out_dtype).itemsize
    if calc_scores == "softmax":
        transc = rows_pad * (m + 1)                   # m exps + 1 reciprocal / column
    else:
        transc = rows_pad * m
    cost = pl.CostEstimate(
        flops=2 * rows_pad * (c_in * hidden + hidden * m),
        transcendentals=transc,
        bytes_accessed=in_bytes * rows_pad * c_in + out_bytes * rows_pad * m,
    )

    kernel = functools.partial(
        scorenet_kernel, calc_scores=calc_scores, bias=float(bias),
        stable_softmax=bool(stable_softmax), approx_recip=bool(approx_softmax_recip))

    out = pl.pallas_call(
        kernel,
        out_shape=jax.ShapeDtypeStruct((B, m, NK_pad), out_dtype),
        grid=(B, n_tiles),
        in_specs=[
            pl.BlockSpec((1, c_in, tm), lambda b, t: (b, 0, t)),
            pl.BlockSpec((hidden, c_in), lambda b, t: (0, 0)),
            pl.BlockSpec((m, hidden), lambda b, t: (0, 0)),
            pl.BlockSpec((m, 1), lambda b, t: (0, 0)),
        ],
        out_specs=pl.BlockSpec((1, m, tm), lambda b, t: (b, 0, t)),
        compiler_params=pltpu.CompilerParams(
            dimension_semantics=("parallel", "parallel")),
        cost_estimate=cost,
    )(x3d, w1t, w2t, b2c)

    out = out[:, :, :NK]
    if channels_last:
        # [B, m, NK] -> [B, N, K, m]: the permute the PyTorch module performs.
        return jnp.transpose(out, (0, 2, 1)).reshape(B, N, K, m)
    # Channels-first: free reshape, no extra HBM pass (downstream can fuse).
    return out.reshape(B, m, N, K)


def scorenet_reference(xyz, w1, w2, b2, calc_scores="softmax", bias=0.0):
    """Pure-JAX reference matching the PyTorch forward (f32 everywhere)."""
    x = jnp.transpose(xyz, (0, 2, 3, 1)).astype(jnp.float32)   # B N K Cin
    h = jnp.maximum(jnp.einsum("bnkc,ch->bnkh", x, w1), 0.0)
    s = jnp.einsum("bnkh,hm->bnkm", h, w2) + b2
    if calc_scores == "softmax":
        s = jax.nn.softmax(s, axis=-1) + bias
    else:
        s = jax.nn.sigmoid(s) + bias
    return s                                                   # B N K m


if __name__ == "__main__":
    # Small shapes consistent with ScoreNet usage in PAConv:
    #   in_channel = 2C = 8, hidden_unit = [16], out_channel (m) = 8,
    #   B = 2 point clouds, N = 64 points, K = 16 neighbors.
    B, C2, N, K = 2, 8, 64, 16
    hidden, m = 16, 8

    key = jax.random.PRNGKey(0)
    k_x, k_w1, k_w2, k_b2 = jax.random.split(key, 4)

    xyz = jax.random.normal(k_x, (B, C2, N, K), dtype=jnp.float32)
    # 1x1 conv weights: PyTorch Conv2d weight is [out, in, 1, 1]; stored here as [in, out].
    w1 = 0.1 * jax.random.normal(k_w1, (C2, hidden), dtype=jnp.float32)
    w2 = 0.1 * jax.random.normal(k_w2, (hidden, m), dtype=jnp.float32)
    b2 = 0.1 * jax.random.normal(k_b2, (m,), dtype=jnp.float32)

    # Tolerance covers bf16 MXU operands + the EUP approx reciprocal in softmax.
    TOL = 5e-3

    # Default path: softmax scores, bias = 0, PyTorch [B, N, K, m] layout.
    out = jax.block_until_ready(
        scorenet_forward(xyz, w1, w2, b2, calc_scores="softmax", bias=0.0))
    ref = scorenet_reference(xyz, w1, w2, b2, bias=0.0)
    assert out.shape == (B, N, K, m)
    assert out.dtype == jnp.float32
    assert float(jnp.max(jnp.abs(out - ref))) < TOL

    # Fused (nonzero) bias epilogue.
    out_b = jax.block_until_ready(
        scorenet_forward(xyz, w1, w2, b2, calc_scores="softmax", bias=0.25))
    ref_b = scorenet_reference(xyz, w1, w2, b2, bias=0.25)
    assert float(jnp.max(jnp.abs(out_b - ref_b))) < TOL

    # Sigmoid scores.
    out_s = jax.block_until_ready(
        scorenet_forward(xyz, w1, w2, b2, calc_scores="sigmoid", bias=0.0))
    ref_s = scorenet_reference(xyz, w1, w2, b2, calc_scores="sigmoid", bias=0.0)
    assert float(jnp.max(jnp.abs(out_s - ref_s))) < TOL

    # Channels-first output (no post-kernel transpose HBM pass).
    out_cf = jax.block_until_ready(
        scorenet_forward(xyz, w1, w2, b2, calc_scores="softmax", bias=0.0,
                         channels_last=False))
    assert out_cf.shape == (B, m, N, K)
    assert float(jnp.max(jnp.abs(jnp.transpose(out_cf, (0, 2, 3, 1)) - ref))) < TOL

    print("KERNEL_OK")
</pallas_src>

<mosaic_0001>
module attributes {stable_mosaic.version = 11 : i64} {
  func.func @scorenet_kernel(%arg0: i32, %arg1: i32, %arg2: memref<1x8x1024xf32, #tpu.memory_space<vmem>>, %arg3: memref<16x8xbf16, #tpu.memory_space<vmem>>, %arg4: memref<8x16xbf16, #tpu.memory_space<vmem>>, %arg5: memref<8x1xf32, #tpu.memory_space<vmem>>, %arg6: memref<1x8x1024xf32, #tpu.memory_space<vmem>>) attributes {dimension_semantics = [#tpu.dimension_semantics<parallel>, #tpu.dimension_semantics<parallel>], iteration_bounds = array<i64: 2, 1>, scalar_prefetch = 0 : i64, scratch_operands = 0 : i64, tpu.core_type = #tpu.core_type<tc>, window_params = [{transform_indices = @transform_0, window_bounds = array<i64: 1, 8, 1024>}, {pipeline_mode = #tpu.pipeline_mode<synchronous>, transform_indices = @transform_1, window_bounds = array<i64: 16, 8>}, {pipeline_mode = #tpu.pipeline_mode<synchronous>, transform_indices = @transform_2, window_bounds = array<i64: 8, 16>}, {pipeline_mode = #tpu.pipeline_mode<synchronous>, transform_indices = @transform_3, window_bounds = array<i64: 8, 1>}, {transform_indices = @transform_4, window_bounds = array<i64: 1, 8, 1024>}]} {
    %c0 = arith.constant 0 : index
    %c0_0 = arith.constant 0 : index
    %c0_1 = arith.constant 0 : index
    %0 = vector.load %arg2[%c0, %c0_0, %c0_1] : memref<1x8x1024xf32, #tpu.memory_space<vmem>>, vector<1x8x1024xf32>
    %1 = vector.shape_cast %0 : vector<1x8x1024xf32> to vector<8x1024xf32>
    %2 = arith.truncf %1 : vector<8x1024xf32> to vector<8x1024xbf16>
    %c0_2 = arith.constant 0 : index
    %c0_3 = arith.constant 0 : index
    %3 = vector.load %arg3[%c0_2, %c0_3] : memref<16x8xbf16, #tpu.memory_space<vmem>>, vector<16x8xbf16>
    %cst = arith.constant dense<0.000000e+00> : vector<16x1024xf32>
    %4 = tpu.matmul %3, %2, %cst {dimension_numbers = #tpu.dot_dimension_numbers<[1], [0], [0], [1], [0, 0, 1, 1], [], []>} : vector<16x8xbf16>, vector<8x1024xbf16>, vector<16x1024xf32> -> vector<16x1024xf32>
    %cst_4 = arith.constant 0.000000e+00 : f32
    %5 = vector.broadcast %cst_4 : f32 to vector<16x1024xf32>
    %6 = arith.maximumf %4, %5 : vector<16x1024xf32>
    %c0_5 = arith.constant 0 : index
    %c0_6 = arith.constant 0 : index
    %7 = vector.load %arg4[%c0_5, %c0_6] : memref<8x16xbf16, #tpu.memory_space<vmem>>, vector<8x16xbf16>
    %8 = arith.truncf %6 : vector<16x1024xf32> to vector<16x1024xbf16>
    %cst_7 = arith.constant dense<0.000000e+00> : vector<8x1024xf32>
    %9 = tpu.matmul %7, %8, %cst_7 {dimension_numbers = #tpu.dot_dimension_numbers<[1], [0], [0], [1], [0, 0, 1, 1], [], []>} : vector<8x16xbf16>, vector<16x1024xbf16>, vector<8x1024xf32> -> vector<8x1024xf32>
    %c0_8 = arith.constant 0 : index
    %c0_9 = arith.constant 0 : index
    %10 = vector.load %arg5[%c0_8, %c0_9] : memref<8x1xf32, #tpu.memory_space<vmem>>, vector<8x1xf32>
    %11 = vector.broadcast %10 : vector<8x1xf32> to vector<8x1024xf32>
    %12 = arith.addf %9, %11 : vector<8x1024xf32>
    %cst_10 = arith.constant dense<0xFF800000> : vector<1024xf32>
    %13 = vector.multi_reduction <maximumf>, %12, %cst_10 [0] : vector<8x1024xf32> to vector<1024xf32>
    %14 = vector.shape_cast %13 : vector<1024xf32> to vector<1x1024xf32>
    %15 = vector.broadcast %14 : vector<1x1024xf32> to vector<8x1024xf32>
    %16 = arith.subf %12, %15 : vector<8x1024xf32>
    %17 = math.exp %16 : vector<8x1024xf32>
    %cst_11 = arith.constant dense<0.000000e+00> : vector<1024xf32>
    %18 = vector.multi_reduction <add>, %17, %cst_11 [0] : vector<8x1024xf32> to vector<1024xf32>
    %19 = vector.shape_cast %18 : vector<1024xf32> to vector<1x1024xf32>
    %20 = tpu.reciprocal %19 {approx = true} : vector<1x1024xf32> -> vector<1x1024xf32>
    %21 = vector.broadcast %20 : vector<1x1024xf32> to vector<8x1024xf32>
    %22 = arith.mulf %17, %21 : vector<8x1024xf32>
    %c0_12 = arith.constant 0 : index
    %c0_13 = arith.constant 0 : index
    %c0_14 = arith.constant 0 : index
    %23 = vector.load %arg6[%c0_12, %c0_13, %c0_14] : memref<1x8x1024xf32, #tpu.memory_space<vmem>>, vector<1x8x1024xf32>
    %24 = vector.shape_cast %23 : vector<1x8x1024xf32> to vector<8x1024xf32>
    %25 = vector.shape_cast %22 : vector<8x1024xf32> to vector<1x8x1024xf32>
    tpu.vector_store %arg6[%c0_12, %c0_13, %c0_14], %25 {strides = array<i32>} : memref<1x8x1024xf32, #tpu.memory_space<vmem>>, vector<1x8x1024xf32>,
    return
  }
  func.func @transform_0(%arg0: i32, %arg1: i32) -> (i32, i32, i32) {
    %c0_i32 = arith.constant 0 : i32
    %c0_i32_0 = arith.constant 0 : i32
    return %arg0, %c0_i32, %arg1 : i32, i32, i32
  }
  func.func @transform_1(%arg0: i32, %arg1: i32) -> (i32, i32) {
    %c0_i32 = arith.constant 0 : i32
    %c0_i32_0 = arith.constant 0 : i32
    %c0_i32_1 = arith.constant 0 : i32
    return %c0_i32, %c0_i32_0 : i32, i32
  }
  func.func @transform_2(%arg0: i32, %arg1: i32) -> (i32, i32) {
    %c0_i32 = arith.constant 0 : i32
    %c0_i32_0 = arith.constant 0 : i32
    %c0_i32_1 = arith.constant 0 : i32
    return %c0_i32, %c0_i32_0 : i32, i32
  }
  func.func @transform_3(%arg0: i32, %arg1: i32) -> (i32, i32) {
    %c0_i32 = arith.constant 0 : i32
    %c0_i32_0 = arith.constant 0 : i32
    %c0_i32_1 = arith.constant 0 : i32
    return %c0_i32, %c0_i32_0 : i32, i32
  }
  func.func @transform_4(%arg0: i32, %arg1: i32) -> (i32, i32, i32) {
    %c0_i32 = arith.constant 0 : i32
    %c0_i32_0 = arith.constant 0 : i32
    return %arg0, %c0_i32, %arg1 : i32, i32, i32
  }
}

</mosaic_0001>

<llo_original>
// kernel: tpu_custom_call.1
$region0: #{tpu_custom_call.1}
  #allocation0 [shape = 'u32[]', space=smem, size = 0x4, offset = 0x4, fixed_abs, tag = 'smem constant byte address 0x4 - core index']
  #allocation1 [shape = 'u32[72,128]{1,0:T(1,128)}', space=vmem, size = 0x9000, scoped, tag = 'internal scratch']
  %s0 = inlined_call_operand.hbm [shape: f32[2,8,1024], index: 0, kind: input, shape index: {}]
  %s1 = inlined_call_operand.vmem [shape: bf16[16,8], index: 1, kind: input, shape index: {}]
  %s2 = inlined_call_operand.vmem [shape: bf16[8,16], index: 2, kind: input, shape index: {}]
  %s3 = inlined_call_operand.vmem [shape: f32[8,1], index: 3, kind: input, shape index: {}]
  %s4 = inlined_call_operand.hbm [shape: f32[2,8,1024], index: 4, kind: output, shape index: {}]
  %s5 = sld [smem:[#allocation0]]
  $region53: #{tpu_custom_call.1} parent=0
    _
  %s7 = ssub.s32 1, %s5
  %s8 = scalar_select 0, %s7, %s5
  $region1: #{tpu_custom_call.1} parent=0
    #allocation2 [shape = 'u8[65536]{0}', space=vmem, size = 0x10000, scoped, tag = 'input window, operand 0']
    #allocation3 [shape = 's32[2]{0}', space=sflag, size = 0x8, scoped, tag = 'scoped memory for tpu_custom_call.1']
    #allocation4 [shape = 's32[2]{0}', space=sflag, size = 0x8, scoped, tag = 'scoped memory for tpu_custom_call.1']
    #allocation5 [shape = 'u8[65536]{0}', space=vmem, size = 0x10000, scoped, tag = 'output window, operand 0']
    %9 = vsyncpa [#allocation3], 0
    %s10 = scalar_lea.sflag [#allocation3], 1
    %11 = vsyncpa %s10, 0
    %12 = vsyncpa [#allocation4], 0
    %s13 = scalar_lea.sflag [#allocation4], 1
    %14 = vsyncpa %s13, 0
    loop: start=0, step=1, limit=4
    $region2: #{tpu_custom_call.1} parent=1 // loop_pre_header
      _
    $region3: #{tpu_custom_call.1} parent=1 // loop_header
      %s16 = sphi 0, %s20
      %p17 = scmp.ge.s32.totalorder %s16, 4
      %s23 = sphi 0, %s35
      %s24 = sphi 0, %s31
      %s25 = sphi 0, %s23
      %s26 = sphi 0, %s24
      %s27 = sphi 0, %s25
      %s28 = sphi 0, %s26
      %s40 = sphi 0, %s42
      %s43 = sphi 0, %s40
      %s44 = sphi 0, %s43
      %s60 = sphi 0, %s44
      %s64 = sphi 0, %s64
      %s66 = sphi 0, %s64
      %s67 = sphi 0, %s66
      %s81 = sphi 0, %s67
      %s85 = sphi 0, %s85
      %s87 = sphi 0, %s85
      %s88 = sphi 0, %s87
      %s102 = sphi 0, %s88
      %s106 = sphi 0, %s106
      %s108 = sphi 0, %s106
      %s109 = sphi 0, %s108
      %s123 = sphi 0, %s109
      %s131 = sphi 0, %s133
      %s134 = sphi 0, %s131
      %s135 = sphi 0, %s134
      %s151 = sphi 0, %s135
    $region4: #{tpu_custom_call.1} parent=1 // loop_header_branch
      %19 = sbr.rel (%p17) target = $region8
    $region5: #{tpu_custom_call.1} parent=1 // loop_body
      %s21 = ssub.s32 %s16, 1
      %s22 = ssub.s32 %s16, 2
      %s29 = sadd.s32 1, %s24
      %p30 = scmp.ge.s32.totalorder %s29, 1
      %s31 = scalar_select %p30, 0, %s29
      %s32 = sadd.s32 1, %s23
      %s33 = scalar_select %p30, %s32, %s23
      %p34 = scmp.ge.s32.totalorder %s33, 2
      %s35 = scalar_select %p34, 0, %s33
      %s36 = ssub.s32 %s23, %s35
      %s37 = ssub.s32 %s24, %s31
      %s38 = sor.u32 %s36, %s37
      %p39 = scmp.eq.s32.totalorder %s38, 0
      %s41 = sadd.s32 %s40, 1
      %s42 = scalar_select %p39, %s40, %s41
      %p45 = pneg %p39
      %p46 = scmp.eq.s32.totalorder %s16, 1
      %p47 = por %p45, %p46
      %p48 = scmp.ne.s32.totalorder %s40, %s43
      %p49 = scmp.eq.s32.totalorder %s16, 0
      %p50 = por %p48, %p49
      %p51 = scmp.ne.s32.totalorder %s40, %s43
      %p52 = scmp.eq.s32.totalorder %s21, 1
      %p53 = por %p51, %p52
      %p54 = scmp.ne.s32.totalorder %s43, %s44
      %p55 = scmp.eq.s32.totalorder %s21, 0
      %p56 = por %p54, %p55
      %p57 = scmp.ne.s32.totalorder %s43, %s44
      %p58 = scmp.eq.s32.totalorder %s22, 1
      %p59 = por %p57, %p58
      %p61 = scmp.ne.s32.totalorder %s44, %s60
      %p62 = scmp.eq.s32.totalorder %s22, 0
      %p63 = por %p61, %p62
      %s65 = sadd.s32 %s64, 1
      %p68 = scmp.eq.s32.totalorder %s16, 1
      %p69 = scmp.ne.s32.totalorder %s64, %s66
      %p70 = scmp.eq.s32.totalorder %s16, 0
      %p71 = por %p69, %p70
      %p72 = scmp.ne.s32.totalorder %s64, %s66
      %p73 = scmp.eq.s32.totalorder %s21, 1
      %p74 = por %p72, %p73
      %p75 = scmp.ne.s32.totalorder %s66, %s67
      %p76 = scmp.eq.s32.totalorder %s21, 0
      %p77 = por %p75, %p76
      %p78 = scmp.ne.s32.totalorder %s66, %s67
      %p79 = scmp.eq.s32.totalorder %s22, 1
      %p80 = por %p78, %p79
      %p82 = scmp.ne.s32.totalorder %s67, %s81
      %p83 = scmp.eq.s32.totalorder %s22, 0
      %p84 = por %p82, %p83
      %s86 = sadd.s32 %s85, 1
      %p89 = scmp.eq.s32.totalorder %s16, 1
      %p90 = scmp.ne.s32.totalorder %s85, %s87
      %p91 = scmp.eq.s32.totalorder %s16, 0
      %p92 = por %p90, %p91
      %p93 = scmp.ne.s32.totalorder %s85, %s87
      %p94 = scmp.eq.s32.totalorder %s21, 1
      %p95 = por %p93, %p94
      %p96 = scmp.ne.s32.totalorder %s87, %s88
      %p97 = scmp.eq.s32.totalorder %s21, 0
      %p98 = por %p96, %p97
      %p99 = scmp.ne.s32.totalorder %s87, %s88
      %p100 = scmp.eq.s32.totalorder %s22, 1
      %p101 = por %p99, %p100
      %p103 = scmp.ne.s32.totalorder %s88, %s102
      %p104 = scmp.eq.s32.totalorder %s22, 0
      %p105 = por %p103, %p104
      %s107 = sadd.s32 %s106, 1
      %p110 = scmp.eq.s32.totalorder %s16, 1
      %p111 = scmp.ne.s32.totalorder %s106, %s108
      %p112 = scmp.eq.s32.totalorder %s16, 0
      %p113 = por %p111, %p112
      %p114 = scmp.ne.s32.totalorder %s106, %s108
      %p115 = scmp.eq.s32.totalorder %s21, 1
      %p116 = por %p114, %p115
      %p117 = scmp.ne.s32.totalorder %s108, %s109
      %p118 = scmp.eq.s32.totalorder %s21, 0
      %p119 = por %p117, %p118
      %p120 = scmp.ne.s32.totalorder %s108, %s109
      %p121 = scmp.eq.s32.totalorder %s22, 1
      %p122 = por %p120, %p121
      %p124 = scmp.ne.s32.totalorder %s109, %s123
      %p125 = scmp.eq.s32.totalorder %s22, 0
      %p126 = por %p124, %p125
      %s127 = ssub.s32 %s23, %s35
      %s128 = ssub.s32 %s24, %s31
      %s129 = sor.u32 %s127, %s128
      %p130 = scmp.eq.s32.totalorder %s129, 0
      %s132 = sadd.s32 %s131, 1
      %s133 = scalar_select %p130, %s131, %s132
      %p136 = pneg %p130
      %p137 = scmp.eq.s32.totalorder %s16, 1
      %p138 = por %p136, %p137
      %p139 = scmp.ne.s32.totalorder %s131, %s134
      %p140 = scmp.eq.s32.totalorder %s16, 0
      %p141 = por %p139, %p140
      %p142 = scmp.ne.s32.totalorder %s131, %s134
      %p143 = scmp.eq.s32.totalorder %s21, 1
      %p144 = por %p142, %p143
      %p145 = scmp.ne.s32.totalorder %s134, %s135
      %p146 = scmp.eq.s32.totalorder %s21, 0
      %p147 = por %p145, %p146
      %p148 = scmp.ne.s32.totalorder %s134, %s135
      %p149 = scmp.eq.s32.totalorder %s22, 1
      %p150 = por %p148, %p149
      %p152 = scmp.ne.s32.totalorder %s135, %s151
      %p153 = scmp.eq.s32.totalorder %s22, 0
      %p154 = por %p152, %p153
      %p155 = scmp.le.s32.totalorder 1, %s16
      %p156 = scmp.lt.s32.totalorder %s16, 3
      %p157 = pnand %p155, %p156
      %p158 = pneg %p157
      // Predicated region
      $region9: #{tpu_custom_call.1} parent=5 // pred_check
        _
      $region10: #{tpu_custom_call.1} parent=5 // pred_check_branch
        %160 = sbr.rel (%p157) target = $region12
      $region11: #{tpu_custom_call.1} parent=5 // pred_region
        %s161 = ssub.s32 %s16, 1
        // Predicated region
        $region13: #{tpu_custom_call.1} parent=11 // pred_check
          %p162 = pneg %p77
        $region14: #{tpu_custom_call.1} parent=11 // pred_check_branch
          %164 = sbr.rel (%p162) target = $region16
        $region15: #{tpu_custom_call.1} parent=11 // pred_region
          _
        $region16: #{tpu_custom_call.1} parent=11 // pred_fallthru
          _
        // Predicated region
        $region17: #{tpu_custom_call.1} parent=11 // pred_check
          %p165 = pneg %p98
        $region18: #{tpu_custom_call.1} parent=11 // pred_check_branch
          %167 = sbr.rel (%p165) target = $region20
        $region19: #{tpu_custom_call.1} parent=11 // pred_region
          _
        $region20: #{tpu_custom_call.1} parent=11 // pred_fallthru
          _
        // Predicated region
        $region21: #{tpu_custom_call.1} parent=11 // pred_check
          %p168 = pneg %p119
        $region22: #{tpu_custom_call.1} parent=11 // pred_check_branch
          %170 = sbr.rel (%p168) target = $region24
        $region23: #{tpu_custom_call.1} parent=11 // pred_region
          _
        $region24: #{tpu_custom_call.1} parent=11 // pred_fallthru
          _
      $region12: #{tpu_custom_call.1} parent=5 // pred_fallthru
        _
      %p171 = scmp.lt.s32.totalorder %s16, 2
      // Predicated region
      $region25: #{tpu_custom_call.1} parent=5 // pred_check
        %p172 = pneg %p171
      $region26: #{tpu_custom_call.1} parent=5 // pred_check_branch
        %174 = sbr.rel (%p172) target = $region28
      $region27: #{tpu_custom_call.1} parent=5 // pred_region
        // Predicated region
        $region29: #{tpu_custom_call.1} parent=27 // pred_check
          %p175 = pneg %p50
        $region30: #{tpu_custom_call.1} parent=27 // pred_check_branch
          %177 = sbr.rel (%p175) target = $region32
        $region31: #{tpu_custom_call.1} parent=27 // pred_region
          %s178 = sand.u32 %s40, 1
          %s179 = scalar_lea.sflag [#allocation3], %s178
          %s180 = sand.u32 %s40, 1
          %s181 = smul.addr %s180, 64
          %s182 = scalar_lea.vmem [#allocation2], %s181
          %s183 = smul.u32 8, %s24
          %185 = vsyncadd %s179, 0
          %s186 = smul.addr %s23, 8
          %s187 = sadd.s32 %s183, %s186
          %s188 = smul.addr %s187, 8
          %s189 = scalar_lea.hbm %s0, %s188
          %s191 = sshll.u32 %s189, 4
          %s192 = int_to_ptr.hbm [resolvable:$true] %s191
          %s193 = sshll.u32 %s182, 4
          %s194 = int_to_ptr.vmem [resolvable:$true] %s193
          %196 = dma.hbm_to_vmem [thread:$0]  %s192, 1024, %s194, %s179
        $region32: #{tpu_custom_call.1} parent=27 // pred_fallthru
          _
      $region28: #{tpu_custom_call.1} parent=5 // pred_fallthru
        _
      %p197 = scmp.le.s32.totalorder 1, %s16
      %p198 = scmp.lt.s32.totalorder %s16, 3
      %p199 = pnand %p197, %p198
      %p200 = pneg %p199
      // Predicated region
      $region33: #{tpu_custom_call.1} parent=5 // pred_check
        _
      $region34: #{tpu_custom_call.1} parent=5 // pred_check_branch
        %202 = sbr.rel (%p199) target = $region36
      $region35: #{tpu_custom_call.1} parent=5 // pred_region
        %s203 = ssub.s32 %s16, 1
        %s204 = sand.u32 %s43, 1
        %s205 = scalar_lea.sflag [#allocation3], %s204
        %s206 = sand.u32 %s43, 1
        %s207 = smul.addr %s206, 64
        %s208 = scalar_lea.vmem [#allocation2], %s207
        // Predicated region
        $region37: #{tpu_custom_call.1} parent=35 // pred_check
          %p209 = pneg %p56
        $region38: #{tpu_custom_call.1} parent=35 // pred_check_branch
          %211 = sbr.rel (%p209) target = $region40
        $region39: #{tpu_custom_call.1} parent=35 // pred_region
          %213 = dma.done %s205, 1024
        $region40: #{tpu_custom_call.1} parent=35 // pred_fallthru
          _
        %s214 = sand.u32 %s43, 1
        %s215 = scalar_lea.sflag [#allocation3], %s214
        %s216 = sand.u32 %s43, 1
        %s217 = smul.addr %s216, 64
        %s218 = scalar_lea.vmem [#allocation2], %s217
        %p219 = pneg %p56
        %p220 = pneg %p53
        %p221 = pneg %p77
        %p222 = pneg %p74
        %p223 = pneg %p98
        %p224 = pneg %p95
        %p225 = pneg %p119
        %p226 = pneg %p116
        %p227 = pneg %p147
        %p228 = pneg %p144
        %s229 = sand.u32 %s134, 1
        %s230 = scalar_lea.sflag [#allocation4], %s229
        %s231 = sand.u32 %s134, 1
        %s232 = smul.addr %s231, 64
        %s233 = scalar_lea.vmem [#allocation5], %s232
        %s234 = smul.u32 8, %s26
        %s235 = smul.u32 8, %s26
        %v237 = vld [vmem:[%s208] sm:$0xff]
        %v238 = vld [vmem:[%s208 + $0x8] sm:$0xff]
        %v239 = vld [vmem:[%s208 + $0x10] sm:$0xff]
        %v240 = vld [vmem:[%s208 + $0x18] sm:$0xff]
        %v241 = vld [vmem:[%s208 + $0x20] sm:$0xff]
        %v242 = vld [vmem:[%s208 + $0x28] sm:$0xff]
        %v243 = vld [vmem:[%s208 + $0x30] sm:$0xff]
        %v244 = vld [vmem:[%s208 + $0x38] sm:$0xff]
        %v245 = vpack.c.bf16 %v237, %v237
        %v246 = vpack.c.bf16 %v238, %v238
        %v247 = vpack.c.bf16 %v239, %v239
        %v248 = vpack.c.bf16 %v240, %v240
        %v249 = vpack.c.bf16 %v241, %v241
        %v250 = vpack.c.bf16 %v242, %v242
        %v251 = vpack.c.bf16 %v243, %v243
        %v252 = vpack.c.bf16 %v244, %v244
        %v253 = vld [vmem:[%s1] sm:$0xf]
        %v254 = vld [vmem:[%s1 + $0x4] sm:$0xf]
        %v257 = vunpack.c.l.b16 %v253
        %v258 = vunpack.c.l.b16 %v254
        %v259 = vpack.c.b16 %v258, %v257
        %vm260 = vcmask 64512
        %v262 = vsel %vm260, %v259, 0
        %vm264 = vcmask 1043456
        %v266 = vsel %vm264, %v245, 0
        %v269 = vsel %vm264, %v246, 0
        %v272 = vsel %vm264, %v247, 0
        %v275 = vsel %vm264, %v248, 0
        %v278 = vsel %vm264, %v249, 0
        %v281 = vsel %vm264, %v250, 0
        %v284 = vsel %vm264, %v251, 0
        %v287 = vsel %vm264, %v252, 0
        %289 = vmatpush.bf16.msra.mxu0 0
        %290 = vmatpush.bf16.msra.mxu0 0
        %291 = vmatpush.bf16.msra.mxu0 0
        %292 = vmatpush.bf16.msra.mxu0 0
        %293 = vmatpush.bf16.msra.mxu0 0
        %294 = vmatpush.bf16.msra.mxu0 0
        %295 = vmatpush.bf16.msra.mxu0 0
        %296 = vmatpush.bf16.msra.mxu0 %v266
        %297 = vmatmul.bf16.gmra.mxu0 %v262
        %v298 = vpop.f32.mrf.mxu0
        %v299 = vadd.f32 0.0, %v298
        %v300 = vpop.f32.mrf.mxu0
        %v301 = vadd.f32 0.0, %v300
        %302 = vdwg.mxu0
        %303 = vmatpush.bf16.msra.mxu0 0
        %304 = vmatpush.bf16.msra.mxu0 0
        %305 = vmatpush.bf16.msra.mxu0 0
        %306 = vmatpush.bf16.msra.mxu0 0
        %307 = vmatpush.bf16.msra.mxu0 0
        %308 = vmatpush.bf16.msra.mxu0 0
        %309 = vmatpush.bf16.msra.mxu0 0
        %310 = vmatpush.bf16.msra.mxu0 %v269
        %311 = vmatmul.bf16.gmra.mxu0 %v262
        %v312 = vpop.f32.mrf.mxu0
        %v313 = vadd.f32 0.0, %v312
        %v314 = vpop.f32.mrf.mxu0
        %v315 = vadd.f32 0.0, %v314
        %316 = vdwg.mxu0
        %317 = vmatpush.bf16.msra.mxu0 0
        %318 = vmatpush.bf16.msra.mxu0 0
        %319 = vmatpush.bf16.msra.mxu0 0
        %320 = vmatpush.bf16.msra.mxu0 0
        %321 = vmatpush.bf16.msra.mxu0 0
        %322 = vmatpush.bf16.msra.mxu0 0
        %323 = vmatpush.bf16.msra.mxu0 0
        %324 = vmatpush.bf16.msra.mxu0 %v272
        %325 = vmatmul.bf16.gmra.mxu0 %v262
        %v326 = vpop.f32.mrf.mxu0
        %v327 = vadd.f32 0.0, %v326
        %v328 = vpop.f32.mrf.mxu0
        %v329 = vadd.f32 0.0, %v328
        %330 = vdwg.mxu0
        %331 = vmatpush.bf16.msra.mxu0 0
        %332 = vmatpush.bf16.msra.mxu0 0
        %333 = vmatpush.bf16.msra.mxu0 0
        %334 = vmatpush.bf16.msra.mxu0 0
        %335 = vmatpush.bf16.msra.mxu0 0
        %336 = vmatpush.bf16.msra.mxu0 0
        %337 = vmatpush.bf16.msra.mxu0 0
        %338 = vmatpush.bf16.msra.mxu0 %v275
        %339 = vmatmul.bf16.gmra.mxu0 %v262
        %v340 = vpop.f32.mrf.mxu0
        %v341 = vadd.f32 0.0, %v340
        %v342 = vpop.f32.mrf.mxu0
        %v343 = vadd.f32 0.0, %v342
        %344 = vdwg.mxu0
        %345 = vmatpush.bf16.msra.mxu0 0
        %346 = vmatpush.bf16.msra.mxu0 0
        %347 = vmatpush.bf16.msra.mxu0 0
        %348 = vmatpush.bf16.msra.mxu0 0
        %349 = vmatpush.bf16.msra.mxu0 0
        %350 = vmatpush.bf16.msra.mxu0 0
        %351 = vmatpush.bf16.msra.mxu0 0
        %352 = vmatpush.bf16.msra.mxu0 %v278
        %353 = vmatmul.bf16.gmra.mxu0 %v262
        %v354 = vpop.f32.mrf.mxu0
        %v355 = vadd.f32 0.0, %v354
        %v356 = vpop.f32.mrf.mxu0
        %v357 = vadd.f32 0.0, %v356
        %358 = vdwg.mxu0
        %359 = vmatpush.bf16.msra.mxu0 0
        %360 = vmatpush.bf16.msra.mxu0 0
        %361 = vmatpush.bf16.msra.mxu0 0
        %362 = vmatpush.bf16.msra.mxu0 0
        %363 = vmatpush.bf16.msra.mxu0 0
        %364 = vmatpush.bf16.msra.mxu0 0
        %365 = vmatpush.bf16.msra.mxu0 0
        %366 = vmatpush.bf16.msra.mxu0 %v281
        %367 = vmatmul.bf16.gmra.mxu0 %v262
        %v368 = vpop.f32.mrf.mxu0
        %v369 = vadd.f32 0.0, %v368
        %v370 = vpop.f32.mrf.mxu0
        %v371 = vadd.f32 0.0, %v370
        %372 = vdwg.mxu0
        %373 = vmatpush.bf16.msra.mxu0 0
        %374 = vmatpush.bf16.msra.mxu0 0
        %375 = vmatpush.bf16.msra.mxu0 0
        %376 = vmatpush.bf16.msra.mxu0 0
        %377 = vmatpush.bf16.msra.mxu0 0
        %378 = vmatpush.bf16.msra.mxu0 0
        %379 = vmatpush.bf16.msra.mxu0 0
        %380 = vmatpush.bf16.msra.mxu0 %v284
        %381 = vmatmul.bf16.gmra.mxu0 %v262
        %v382 = vpop.f32.mrf.mxu0
        %v383 = vadd.f32 0.0, %v382
        %v384 = vpop.f32.mrf.mxu0
        %v385 = vadd.f32 0.0, %v384
        %386 = vdwg.mxu0
        %387 = vmatpush.bf16.msra.mxu0 0
        %388 = vmatpush.bf16.msra.mxu0 0
        %389 = vmatpush.bf16.msra.mxu0 0
        %390 = vmatpush.bf16.msra.mxu0 0
        %391 = vmatpush.bf16.msra.mxu0 0
        %392 = vmatpush.bf16.msra.mxu0 0
        %393 = vmatpush.bf16.msra.mxu0 0
        %394 = vmatpush.bf16.msra.mxu0 %v287
        %395 = vmatmul.bf16.gmra.mxu0 %v262
        %v396 = vpop.f32.mrf.mxu0
        %v397 = vadd.f32 0.0, %v396
        %v398 = vpop.f32.mrf.mxu0
        %v399 = vadd.f32 0.0, %v398
        %400 = vdwg.mxu0
        %v401 = vmax.f32 %v299, 0.0
        %v402 = vmax.f32 %v313, 0.0
        %v403 = vmax.f32 %v327, 0.0
        %v404 = vmax.f32 %v341, 0.0
        %v405 = vmax.f32 %v355, 0.0
        %v406 = vmax.f32 %v369, 0.0
        %v407 = vmax.f32 %v383, 0.0
        %v408 = vmax.f32 %v397, 0.0
        %v409 = vmax.f32 %v301, 0.0
        %v410 = vmax.f32 %v315, 0.0
        %v411 = vmax.f32 %v329, 0.0
        %v412 = vmax.f32 %v343, 0.0
        %v413 = vmax.f32 %v357, 0.0
        %v414 = vmax.f32 %v371, 0.0
        %v415 = vmax.f32 %v385, 0.0
        %v416 = vmax.f32 %v399, 0.0
        %v417 = vld [vmem:[%s2] sm:$0xf]
        %v418 = vpack.c.bf16 %v409, %v401
        %v419 = vpack.c.bf16 %v410, %v402
        %v420 = vpack.c.bf16 %v411, %v403
        %v421 = vpack.c.bf16 %v412, %v404
        %v422 = vpack.c.bf16 %v413, %v405
        %v423 = vpack.c.bf16 %v414, %v406
        %v424 = vpack.c.bf16 %v415, %v407
        %v425 = vpack.c.bf16 %v416, %v408
        %v426 = vld [vmem:[%s3] sm:$0xff]
        %428 = vset.pattern.permute.xlu0 0
        %429 = vperm.xlu0 %428, %v426
        %v430 = vpop.permute.xlu0 %429
        %vm432 = vcmask 130048
        %v434 = vsel %vm432, %v417, 0
        %436 = vmatpush.bf16.msra.mxu0 0
        %437 = vmatpush.bf16.msra.mxu0 0
        %438 = vmatpush.bf16.msra.mxu0 0
        %439 = vmatpush.bf16.msra.mxu0 0
        %440 = vmatpush.bf16.msra.mxu0 0
        %441 = vmatpush.bf16.msra.mxu0 0
        %442 = vmatpush.bf16.msra.mxu0 0
        %443 = vmatpush.bf16.msra.mxu0 %v418
        %444 = vmatmul.bf16.gmra.mxu0 %v434
        %v445 = vpop.f32.mrf.mxu0
        %v446 = vadd.f32 %v430, %v445
        %v447 = vpop.f32.mrf.mxu0
        %448 = vdwg.mxu0
        %449 = vmatpush.bf16.msra.mxu0 0
        %450 = vmatpush.bf16.msra.mxu0 0
        %451 = vmatpush.bf16.msra.mxu0 0
        %452 = vmatpush.bf16.msra.mxu0 0
        %453 = vmatpush.bf16.msra.mxu0 0
        %454 = vmatpush.bf16.msra.mxu0 0
        %455 = vmatpush.bf16.msra.mxu0 0
        %456 = vmatpush.bf16.msra.mxu0 %v419
        %457 = vmatmul.bf16.gmra.mxu0 %v434
        %v458 = vpop.f32.mrf.mxu0
        %v459 = vadd.f32 %v430, %v458
        %v460 = vpop.f32.mrf.mxu0
        %461 = vdwg.mxu0
        %462 = vmatpush.bf16.msra.mxu0 0
        %463 = vmatpush.bf16.msra.mxu0 0
        %464 = vmatpush.bf16.msra.mxu0 0
        %465 = vmatpush.bf16.msra.mxu0 0
        %466 = vmatpush.bf16.msra.mxu0 0
        %467 = vmatpush.bf16.msra.mxu0 0
        %468 = vmatpush.bf16.msra.mxu0 0
        %469 = vmatpush.bf16.msra.mxu0 %v420
        %470 = vmatmul.bf16.gmra.mxu0 %v434
        %v471 = vpop.f32.mrf.mxu0
        %v472 = vadd.f32 %v430, %v471
        %v473 = vpop.f32.mrf.mxu0
        %474 = vdwg.mxu0
        %475 = vmatpush.bf16.msra.mxu0 0
        %476 = vmatpush.bf16.msra.mxu0 0
        %477 = vmatpush.bf16.msra.mxu0 0
        %478 = vmatpush.bf16.msra.mxu0 0
        %479 = vmatpush.bf16.msra.mxu0 0
        %480 = vmatpush.bf16.msra.mxu0 0
        %481 = vmatpush.bf16.msra.mxu0 0
        %482 = vmatpush.bf16.msra.mxu0 %v421
        %483 = vmatmul.bf16.gmra.mxu0 %v434
        %v484 = vpop.f32.mrf.mxu0
        %v485 = vadd.f32 %v430, %v484
        %v486 = vpop.f32.mrf.mxu0
        %487 = vdwg.mxu0
        %488 = vmatpush.bf16.msra.mxu0 0
        %489 = vmatpush.bf16.msra.mxu0 0
        %490 = vmatpush.bf16.msra.mxu0 0
        %491 = vmatpush.bf16.msra.mxu0 0
        %492 = vmatpush.bf16.msra.mxu0 0
        %493 = vmatpush.bf16.msra.mxu0 0
        %494 = vmatpush.bf16.msra.mxu0 0
        %495 = vmatpush.bf16.msra.mxu0 %v422
        %496 = vmatmul.bf16.gmra.mxu0 %v434
        %v497 = vpop.f32.mrf.mxu0
        %v498 = vadd.f32 %v430, %v497
        %v499 = vpop.f32.mrf.mxu0
        %500 = vdwg.mxu0
        %501 = vmatpush.bf16.msra.mxu0 0
        %502 = vmatpush.bf16.msra.mxu0 0
        %503 = vmatpush.bf16.msra.mxu0 0
        %504 = vmatpush.bf16.msra.mxu0 0
        %505 = vmatpush.bf16.msra.mxu0 0
        %506 = vmatpush.bf16.msra.mxu0 0
        %507 = vmatpush.bf16.msra.mxu0 0
        %508 = vmatpush.bf16.msra.mxu0 %v423
        %509 = vmatmul.bf16.gmra.mxu0 %v434
        %v510 = vpop.f32.mrf.mxu0
        %v511 = vadd.f32 %v430, %v510
        %v512 = vpop.f32.mrf.mxu0
        %513 = vdwg.mxu0
        %514 = vmatpush.bf16.msra.mxu0 0
        %515 = vmatpush.bf16.msra.mxu0 0
        %516 = vmatpush.bf16.msra.mxu0 0
        %517 = vmatpush.bf16.msra.mxu0 0
        %518 = vmatpush.bf16.msra.mxu0 0
        %519 = vmatpush.bf16.msra.mxu0 0
        %520 = vmatpush.bf16.msra.mxu0 0
        %521 = vmatpush.bf16.msra.mxu0 %v424
        %522 = vmatmul.bf16.gmra.mxu0 %v434
        %v523 = vpop.f32.mrf.mxu0
        %v524 = vadd.f32 %v430, %v523
        %v525 = vpop.f32.mrf.mxu0
        %526 = vdwg.mxu0
        %527 = vmatpush.bf16.msra.mxu0 0
        %528 = vmatpush.bf16.msra.mxu0 0
        %529 = vmatpush.bf16.msra.mxu0 0
        %530 = vmatpush.bf16.msra.mxu0 0
        %531 = vmatpush.bf16.msra.mxu0 0
        %532 = vmatpush.bf16.msra.mxu0 0
        %533 = vmatpush.bf16.msra.mxu0 0
        %534 = vmatpush.bf16.msra.mxu0 %v425
        %535 = vmatmul.bf16.gmra.mxu0 %v434
        %v536 = vpop.f32.mrf.mxu0
        %v537 = vadd.f32 %v430, %v536
        %v538 = vpop.f32.mrf.mxu0
        %539 = vdwg.mxu0
        %v540 = vrot.slane %v446, 4
        %v541 = vmax.f32 %v446, %v540
        %v542 = vrot.slane %v541, 2
        %v543 = vmax.f32 %v541, %v542
        %v544 = vrot.slane %v543, 1
        %v545 = vmax.f32 %v543, %v544
        %v546 = vrot.slane %v459, 4
        %v547 = vmax.f32 %v459, %v546
        %v548 = vrot.slane %v547, 2
        %v549 = vmax.f32 %v547, %v548
        %v550 = vrot.slane %v549, 1
        %v551 = vmax.f32 %v549, %v550
        %v552 = vrot.slane %v472, 4
        %v553 = vmax.f32 %v472, %v552
        %v554 = vrot.slane %v553, 2
        %v555 = vmax.f32 %v553, %v554
        %v556 = vrot.slane %v555, 1
        %v557 = vmax.f32 %v555, %v556
        %v558 = vrot.slane %v485, 4
        %v559 = vmax.f32 %v485, %v558
        %v560 = vrot.slane %v559, 2
        %v561 = vmax.f32 %v559, %v560
        %v562 = vrot.slane %v561, 1
        %v563 = vmax.f32 %v561, %v562
        %v564 = vrot.slane %v498, 4
        %v565 = vmax.f32 %v498, %v564
        %v566 = vrot.slane %v565, 2
        %v567 = vmax.f32 %v565, %v566
        %v568 = vrot.slane %v567, 1
        %v569 = vmax.f32 %v567, %v568
        %v570 = vrot.slane %v511, 4
        %v571 = vmax.f32 %v511, %v570
        %v572 = vrot.slane %v571, 2
        %v573 = vmax.f32 %v571, %v572
        %v574 = vrot.slane %v573, 1
        %v575 = vmax.f32 %v573, %v574
        %v576 = vrot.slane %v524, 4
        %v577 = vmax.f32 %v524, %v576
        %v578 = vrot.slane %v577, 2
        %v579 = vmax.f32 %v577, %v578
        %v580 = vrot.slane %v579, 1
        %v581 = vmax.f32 %v579, %v580
        %v582 = vrot.slane %v537, 4
        %v583 = vmax.f32 %v537, %v582
        %v584 = vrot.slane %v583, 2
        %v585 = vmax.f32 %v583, %v584
        %v586 = vrot.slane %v585, 1
        %v587 = vmax.f32 %v585, %v586
        %v588 = vsub.f32 %v446, %v545
        %v589 = vsub.f32 %v459, %v551
        %v590 = vsub.f32 %v472, %v557
        %v591 = vsub.f32 %v485, %v563
        %v592 = vsub.f32 %v498, %v569
        %v593 = vsub.f32 %v511, %v575
        %v594 = vsub.f32 %v524, %v581
        %v595 = vsub.f32 %v537, %v587
        %v596 = vmul.f32 %v588, 1.442695
        %v597 = vpow.pop %v596
        %v598 = vmul.f32 %v589, 1.442695
        %v599 = vpow.pop %v598
        %v600 = vmul.f32 %v590, 1.442695
        %v601 = vpow.pop %v600
        %v602 = vmul.f32 %v591, 1.442695
        %v603 = vpow.pop %v602
        %v604 = vmul.f32 %v592, 1.442695
        %v605 = vpow.pop %v604
        %v606 = vmul.f32 %v593, 1.442695
        %v607 = vpow.pop %v606
        %v608 = vmul.f32 %v594, 1.442695
        %v609 = vpow.pop %v608
        %v610 = vmul.f32 %v595, 1.442695
        %v611 = vpow.pop %v610
        %v612 = vrot.slane %v597, 4
        %v613 = vadd.f32 %v597, %v612
        %v614 = vrot.slane %v613, 2
        %v615 = vadd.f32 %v613, %v614
        %v616 = vrot.slane %v615, 1
        %v617 = vadd.f32 %v615, %v616
        %v618 = vrot.slane %v599, 4
        %v619 = vadd.f32 %v599, %v618
        %v620 = vrot.slane %v619, 2
        %v621 = vadd.f32 %v619, %v620
        %v622 = vrot.slane %v621, 1
        %v623 = vadd.f32 %v621, %v622
        %v624 = vrot.slane %v601, 4
        %v625 = vadd.f32 %v601, %v624
        %v626 = vrot.slane %v625, 2
        %v627 = vadd.f32 %v625, %v626
        %v628 = vrot.slane %v627, 1
        %v629 = vadd.f32 %v627, %v628
        %v630 = vrot.slane %v603, 4
        %v631 = vadd.f32 %v603, %v630
        %v632 = vrot.slane %v631, 2
        %v633 = vadd.f32 %v631, %v632
        %v634 = vrot.slane %v633, 1
        %v635 = vadd.f32 %v633, %v634
        %v636 = vrot.slane %v605, 4
        %v637 = vadd.f32 %v605, %v636
        %v638 = vrot.slane %v637, 2
        %v639 = vadd.f32 %v637, %v638
        %v640 = vrot.slane %v639, 1
        %v641 = vadd.f32 %v639, %v640
        %v642 = vrot.slane %v607, 4
        %v643 = vadd.f32 %v607, %v642
        %v644 = vrot.slane %v643, 2
        %v645 = vadd.f32 %v643, %v644
        %v646 = vrot.slane %v645, 1
        %v647 = vadd.f32 %v645, %v646
        %v648 = vrot.slane %v609, 4
        %v649 = vadd.f32 %v609, %v648
        %v650 = vrot.slane %v649, 2
        %v651 = vadd.f32 %v649, %v650
        %v652 = vrot.slane %v651, 1
        %v653 = vadd.f32 %v651, %v652
        %v654 = vrot.slane %v611, 4
        %v655 = vadd.f32 %v611, %v654
        %v656 = vrot.slane %v655, 2
        %v657 = vadd.f32 %v655, %v656
        %v658 = vrot.slane %v657, 1
        %v659 = vadd.f32 %v657, %v658
        %v660 = vrcp.pop %v617
        %v661 = vrcp.pop %v623
        %v662 = vrcp.pop %v629
        %v663 = vrcp.pop %v635
        %v664 = vrcp.pop %v641
        %v665 = vrcp.pop %v647
        %v666 = vrcp.pop %v653
        %v667 = vrcp.pop %v659
        %v668 = vmul.f32 %v597, %v660
        %v669 = vmul.f32 %v599, %v661
        %v670 = vmul.f32 %v601, %v662
        %v671 = vmul.f32 %v603, %v663
        %v672 = vmul.f32 %v605, %v664
        %v673 = vmul.f32 %v607, %v665
        %v674 = vmul.f32 %v609, %v666
        %v675 = vmul.f32 %v611, %v667
        %676 = vst [vmem:[%s233] sm:$0xff] %v668
        %677 = vst [vmem:[%s233 + $0x8] sm:$0xff] %v669
        %678 = vst [vmem:[%s233 + $0x10] sm:$0xff] %v670
        %679 = vst [vmem:[%s233 + $0x18] sm:$0xff] %v671
        %680 = vst [vmem:[%s233 + $0x20] sm:$0xff] %v672
        %681 = vst [vmem:[%s233 + $0x28] sm:$0xff] %v673
        %682 = vst [vmem:[%s233 + $0x30] sm:$0xff] %v674
        %683 = vst [vmem:[%s233 + $0x38] sm:$0xff] %v675
        %s684 = sand.u32 %s134, 1
        %s685 = scalar_lea.sflag [#allocation4], %s684
        %s686 = sand.u32 %s134, 1
        %s687 = smul.addr %s686, 64
        %s688 = scalar_lea.vmem [#allocation5], %s687
        // Predicated region
        $region41: #{tpu_custom_call.1} parent=35 // pred_check
          %p689 = pneg %p144
        $region42: #{tpu_custom_call.1} parent=35 // pred_check_branch
          %691 = sbr.rel (%p689) target = $region44
        $region43: #{tpu_custom_call.1} parent=35 // pred_region
          %s692 = smul.u32 8, %s26
          %694 = vsyncadd %s685, 0
          %s695 = smul.addr %s25, 8
          %s696 = sadd.s32 %s692, %s695
          %s697 = smul.addr %s696, 8
          %s698 = scalar_lea.hbm %s4, %s697
          %s700 = sshll.u32 %s688, 4
          %s701 = int_to_ptr.vmem [resolvable:$true] %s700
          %s702 = sshll.u32 %s698, 4
          %s703 = int_to_ptr.hbm [resolvable:$true] %s702
          %705 = dma.vmem_to_hbm [thread:$0]  %s701, 1024, %s703, %s685
        $region44: #{tpu_custom_call.1} parent=35 // pred_fallthru
          _
      $region36: #{tpu_custom_call.1} parent=5 // pred_fallthru
        _
      %p706 = scmp.le.s32.totalorder 2, %s16
      // Predicated region
      $region45: #{tpu_custom_call.1} parent=5 // pred_check
        %p707 = pneg %p706
      $region46: #{tpu_custom_call.1} parent=5 // pred_check_branch
        %709 = sbr.rel (%p707) target = $region48
      $region47: #{tpu_custom_call.1} parent=5 // pred_region
        %s710 = ssub.s32 %s16, 2
        // Predicated region
        $region49: #{tpu_custom_call.1} parent=47 // pred_check
          %p711 = pneg %p150
        $region50: #{tpu_custom_call.1} parent=47 // pred_check_branch
          %713 = sbr.rel (%p711) target = $region52
        $region51: #{tpu_custom_call.1} parent=47 // pred_region
          %s714 = sand.u32 %s135, 1
          %s715 = scalar_lea.sflag [#allocation4], %s714
          %s716 = sand.u32 %s135, 1
          %s717 = smul.addr %s716, 64
          %s718 = scalar_lea.vmem [#allocation5], %s717
          %720 = dma.done %s715, 1024
        $region52: #{tpu_custom_call.1} parent=47 // pred_fallthru
          _
      $region48: #{tpu_custom_call.1} parent=5 // pred_fallthru
        _
    $region6: #{tpu_custom_call.1} parent=1 // loop_footer
      %s20 = sadd.s32 1, %s16
    $region7: #{tpu_custom_call.1} parent=1 // loop_footer_branch
      %15 = sbr.rel target = $region3
    $region8: #{tpu_custom_call.1} parent=1 // loop_exit
      _
    %721 = vsyncpa [#allocation3], 1
    %s722 = scalar_lea.sflag [#allocation3], 1
    %723 = vsyncpa %s722, 1
    %724 = vsyncpa [#allocation4], 1
    %s725 = scalar_lea.sflag [#allocation4], 1
    %726 = vsyncpa %s725, 1

</llo_original>
